<compile_context>
chip_gen: v5e
topology: v5e:2x2
jax: 0.10.0
libtpu: 0.0.40
codegen_flags: <defaults>
</compile_context>

<pallas_src>
import functools

import jax
import jax.numpy as jnp
from jax.experimental import pallas as pl
from jax.experimental.pallas import tpu as pltpu


def _apply_activation(x, name):
    if name == "tanh":
        return jnp.tanh(x)
    if name == "sigmoid":
        return jax.nn.sigmoid(x)
    if name == "relu":
        return jnp.maximum(x, 0.0)
    raise ValueError(f"unknown activation: {name}")


def _round_up(n, m):
    return ((n + m - 1) // m) * m


# ---------------------------------------------------------------------------
# Kernels: one grid step == one time-CHUNK (Tc steps) for one batch tile.
#   args: (xw_ref, h0_ref, w_ref, [gamma_ref, beta_ref,] o_ref, h_ref)
#   xw_ref : (Tc, bt, h_pad) f32   precomputed x@W_i2h + b_h
#   w_ref  : (h_pad, h_pad) bf16   W_h2h (VMEM-resident, constant index_map)
#   h_ref  : (bt, h_pad)    f32    hidden-state carry (scratch)
# ---------------------------------------------------------------------------
def _rnn_seq_kernel(xw_ref, h0_ref, w_ref, o_ref, h_ref, *, activation, tc):
    # Seed the f32 hidden carry at the start of this batch tile's sequence
    # (time-chunk axis is the inner, "arbitrary" grid axis).
    @pl.when(pl.program_id(1) == 0)
    def _():
        h_ref[...] = h0_ref[...]

    # Fully unrolled chunk loop (tc is a small static Python int) => all ref
    # indices are static.  Per step: one (bt,h_pad)x(h_pad,h_pad) MXU dot with
    # bf16 inputs / f32 accumulation, f32 activation, one lane-dense store.
    for t in range(tc):
        h_in = h_ref[...].astype(w_ref.dtype)          # bf16 only at MXU input
        pre = xw_ref[t] + jnp.dot(h_in, w_ref[...],
                                  preferred_element_type=jnp.float32)
        h_new = _apply_activation(pre, activation)
        h_ref[...] = h_new                              # carried in f32
        o_ref[t] = h_new.astype(o_ref.dtype)


def _rnn_seq_ln_kernel(xw_ref, h0_ref, w_ref, g_ref, beta_ref, o_ref, h_ref, *,
                       activation, tc, hidden, eps):
    @pl.when(pl.program_id(1) == 0)
    def _():
        h_ref[...] = h0_ref[...]

    inv_h = 1.0 / hidden                 # hoisted out of the step loop
    gamma = g_ref[...]
    beta = beta_ref[...]

    for t in range(tc):
        h_in = h_ref[...].astype(w_ref.dtype)
        pre = xw_ref[t] + jnp.dot(h_in, w_ref[...],
                                  preferred_element_type=jnp.float32)
        # LayerNorm over the REAL hidden columns only.  Padded columns of
        # `pre` are exactly zero (padded W rows/cols, bias are zero), so plain
        # sums already equal sums over the real columns; divide by the true H
        # and use the one-pass form var = E[x^2] - mean^2.
        mean = jnp.sum(pre, axis=-1, keepdims=True) * inv_h
        ex2 = jnp.sum(pre * pre, axis=-1, keepdims=True) * inv_h
        var = jnp.maximum(ex2 - mean * mean, 0.0)
        norm = (pre - mean) * jax.lax.rsqrt(var + eps)
        pre_ln = norm * gamma + beta     # padded gamma/beta are zero
        h_new = _apply_activation(pre_ln, activation)
        h_ref[...] = h_new
        o_ref[t] = h_new.astype(o_ref.dtype)


# ---------------------------------------------------------------------------
# Wrappers
# ---------------------------------------------------------------------------
def rnn_sequence_forward(xs, h0, W_i2h, W_h2h, b_h, *, activation="tanh",
                         ln_gamma=None, ln_beta=None, block_b=None,
                         time_chunk=8, out_dtype=jnp.bfloat16,
                         use_bf16=True, eps=1e-5, return_padded=False,
                         interpret=False):
    """Runs T fused RNNCell steps.

    xs: (T, B, I) inputs, h0: (B, H) initial hidden state.
    Returns all hidden states, shape (T, B, H) in `out_dtype`
    (or the lane/time/batch-padded array if return_padded=True, which skips
    the trailing XLA slice pass).
    """
    T, B, I = xs.shape
    H = W_h2h.shape[0]
    assert W_i2h.shape == (I, H) and W_h2h.shape == (H, H)

    h_pad = _round_up(H, 128)
    b_pad = _round_up(B, 8)

    # Batch tile: fill the MXU M dimension (<=256) but prefer >=2 batch tiles
    # so the "parallel" axis can span both v7x TensorCores.
    if block_b is None:
        bt = min(b_pad, 256)
        if bt == b_pad and b_pad >= 32 and (b_pad // 2) % 8 == 0:
            bt = b_pad // 2
    else:
        bt = int(block_b)
    assert bt % 8 == 0 or bt == b_pad, "batch tile must be a multiple of 8"
    b_pad = _round_up(b_pad, bt)
    nb = b_pad // bt

    # Time chunk: amortizes per-grid-step fixed cost and DMA setup.
    tc = max(1, min(int(time_chunk), T))
    t_pad = _round_up(T, tc)
    n_chunks = t_pad // tc

    mxu_dtype = jnp.bfloat16 if use_bf16 else jnp.float32

    # ---- Hoisted input projection (outside the serial recurrence): one big
    # (T*B, I) x (I, H) matmul with bf16 inputs / f32 accumulation, bias folded
    # in.  The kernel then only does the recurrent K = h_pad matmul per step.
    xw = jnp.dot(xs.reshape(T * B, I).astype(mxu_dtype),
                 W_i2h.astype(mxu_dtype),
                 preferred_element_type=jnp.float32)
    xw = (xw + b_h.reshape(1, H).astype(jnp.float32)).reshape(T, B, H)
    xw_p = jnp.zeros((t_pad, b_pad, h_pad), jnp.float32).at[:T, :B, :H].set(xw)

    h0_p = jnp.zeros((b_pad, h_pad), jnp.float32).at[:B, :H].set(
        h0.astype(jnp.float32))
    W_p = jnp.zeros((h_pad, h_pad), mxu_dtype).at[:H, :H].set(
        W_h2h.astype(mxu_dtype))

    const = lambda b, c: (0, 0)                         # VMEM-resident params
    xw_spec = pl.BlockSpec((tc, bt, h_pad), lambda b, c: (c, b, 0))
    h0_spec = pl.BlockSpec((bt, h_pad), lambda b, c: (b, 0))
    w_spec = pl.BlockSpec((h_pad, h_pad), const)
    vec_spec = pl.BlockSpec((1, h_pad), const)
    out_spec = pl.BlockSpec((tc, bt, h_pad), lambda b, c: (c, b, 0))

    use_ln = ln_gamma is not None
    if use_ln:
        assert ln_beta is not None
        g_p = jnp.zeros((1, h_pad), jnp.float32).at[0, :H].set(
            ln_gamma.reshape(-1).astype(jnp.float32))
        be_p = jnp.zeros((1, h_pad), jnp.float32).at[0, :H].set(
            ln_beta.reshape(-1).astype(jnp.float32))
        kernel = functools.partial(_rnn_seq_ln_kernel, activation=activation,
                                   tc=tc, hidden=H, eps=eps)
        inputs = (xw_p, h0_p, W_p, g_p, be_p)
        in_specs = [xw_spec, h0_spec, w_spec, vec_spec, vec_spec]
    else:
        kernel = functools.partial(_rnn_seq_kernel, activation=activation,
                                   tc=tc)
        inputs = (xw_p, h0_p, W_p)
        in_specs = [xw_spec, h0_spec, w_spec]

    # Explicit VMEM budget: W (x2 for default double-buffering) + pipelined
    # xw / out / h0 blocks + f32 hidden-carry scratch + LN vectors + headroom.
    out_isz = jnp.dtype(out_dtype).itemsize
    w_isz = jnp.dtype(mxu_dtype).itemsize
    vmem_bytes = (2 * h_pad * h_pad * w_isz
                  + 2 * tc * bt * h_pad * 4
                  + 2 * tc * bt * h_pad * out_isz
                  + 2 * bt * h_pad * 4
                  + bt * h_pad * 4
                  + 8 * h_pad * 4)
    vmem_limit = min(128 * 1024 * 1024,
                     max(8 * 1024 * 1024, int(1.5 * vmem_bytes) + (1 << 20)))

    n_trans = t_pad * b_pad * h_pad if activation in ("tanh", "sigmoid") else 0
    cost = pl.CostEstimate(
        flops=2 * t_pad * b_pad * h_pad * h_pad,
        transcendentals=n_trans,
        bytes_accessed=(t_pad * b_pad * h_pad * 4            # xw read
                        + h_pad * h_pad * w_isz               # W
                        + b_pad * h_pad * 4                   # h0
                        + (2 * h_pad * 4 if use_ln else 0)    # gamma/beta
                        + t_pad * b_pad * h_pad * out_isz))   # out write

    out = pl.pallas_call(
        kernel,
        out_shape=jax.ShapeDtypeStruct((t_pad, b_pad, h_pad), out_dtype),
        grid=(nb, n_chunks),
        in_specs=in_specs,
        out_specs=out_spec,
        scratch_shapes=[pltpu.VMEM((bt, h_pad), jnp.float32)],  # f32 h carry
        compiler_params=pltpu.CompilerParams(
            dimension_semantics=("parallel", "arbitrary"),
            vmem_limit_bytes=vmem_limit),
        cost_estimate=cost,
        interpret=interpret,
    )(*inputs)

    if return_padded:
        return out
    return out[:T, :B, :H]


def rnn_cell_forward(x, h_prev, W_i2h, W_h2h, b_h, **kwargs):
    """One RNNCell step (matches the PyTorch module's forward). x: (B, I)."""
    kwargs.setdefault("time_chunk", 1)
    out = rnn_sequence_forward(x[None], h_prev, W_i2h, W_h2h, b_h, **kwargs)
    return out[0]


# ---------------------------------------------------------------------------
# Parameter init mirroring RNNCell._reset_parameters
# ---------------------------------------------------------------------------
def init_params(key, input_size, hidden_size, activation="tanh",
                identity_init=False):
    k1, k2 = jax.random.split(key)
    gain = {"tanh": 5.0 / 3.0, "relu": float(jnp.sqrt(2.0)),
            "sigmoid": 1.0}[activation]
    std = gain * jnp.sqrt(2.0 / (input_size + hidden_size))
    W_i2h = std * jax.random.normal(k1, (input_size, hidden_size), jnp.float32)
    a = jax.random.normal(k2, (hidden_size, hidden_size), jnp.float32)
    q, r = jnp.linalg.qr(a)
    W_h2h = q * jnp.sign(jnp.diag(r))[None, :]
    if identity_init:
        W_h2h = jnp.eye(hidden_size, dtype=jnp.float32)
    b_h = jnp.zeros((hidden_size,), jnp.float32)
    return W_i2h, W_h2h, b_h


def reset_hidden(batch_size, hidden_size):
    return jnp.zeros((batch_size, hidden_size), jnp.float32)


if __name__ == "__main__":
    key = jax.random.PRNGKey(0)
    k_param, k_x, k_h = jax.random.split(key, 3)

    T, B, I, H = 16, 32, 16, 32
    activation = "tanh"

    W_i2h, W_h2h, b_h = init_params(k_param, I, H, activation)
    xs = jax.random.normal(k_x, (T, B, I), jnp.float32)
    h_rand = jax.random.normal(k_h, (B, H), jnp.float32)
    h0 = reset_hidden(B, H)
    gamma = jnp.ones((H,), jnp.float32)
    beta = jnp.zeros((H,), jnp.float32)

    # 1) single step from a nonzero hidden state (== module forward)
    h1 = rnn_cell_forward(xs[0], h_rand, W_i2h, W_h2h, b_h,
                          activation=activation)
    # 2) fused full sequence from the zero hidden state
    hs = rnn_sequence_forward(xs, h0, W_i2h, W_h2h, b_h, activation=activation)
    # 3) fused sequence with LayerNorm
    hs_ln = rnn_sequence_forward(xs, h0, W_i2h, W_h2h, b_h,
                                 activation=activation,
                                 ln_gamma=gamma, ln_beta=beta)
    jax.block_until_ready((h1, hs, hs_ln))

    h1 = h1.astype(jnp.float32)
    hs = hs.astype(jnp.float32)
    hs_ln = hs_ln.astype(jnp.float32)

    # ---- references --------------------------------------------------------
    def ref_step(x_t, h, *, ln, cast):
        if cast:   # emulate bf16-at-MXU-input / f32-accumulate / f32 h carry
            dot = lambda a, b: jnp.dot(a.astype(jnp.bfloat16),
                                       b.astype(jnp.bfloat16),
                                       preferred_element_type=jnp.float32)
        else:
            dot = lambda a, b: jnp.dot(a, b)
        pre = dot(x_t, W_i2h) + b_h + dot(h, W_h2h)
        if ln:
            mean = jnp.mean(pre, axis=-1, keepdims=True)
            var = jnp.mean((pre - mean) ** 2, axis=-1, keepdims=True)
            pre = (pre - mean) * jax.lax.rsqrt(var + 1e-5) * gamma + beta
        return jnp.tanh(pre)

    def ref_seq(x_all, h_init, *, ln, cast):
        h = h_init
        outs = []
        for t in range(x_all.shape[0]):
            h = ref_step(x_all[t], h, ln=ln, cast=cast)
            outs.append(h)
        return jnp.stack(outs)

    # matched (bf16-input, f32-accumulate, f32-carry) references
    r1 = ref_step(xs[0], h_rand, ln=False, cast=True)
    rs = ref_seq(xs, h0, ln=False, cast=True)
    rs_ln = ref_seq(xs, h0, ln=True, cast=True)
    assert jnp.allclose(h1, r1, atol=2e-2, rtol=2e-2), "single-step mismatch"
    assert jnp.allclose(hs, rs, atol=2e-2, rtol=2e-2), "sequence mismatch"
    assert jnp.allclose(hs_ln, rs_ln, atol=2e-2, rtol=2e-2), "LN mismatch"

    # full-f32 semantic sanity check (exact PyTorch math), loose bf16 bound
    rs_f32 = ref_seq(xs, h0, ln=False, cast=False)
    assert float(jnp.max(jnp.abs(hs - rs_f32))) < 1e-1, "semantic check failed"

    assert h1.shape == (B, H) and hs.shape == (T, B, H)
    print("KERNEL_OK")
</pallas_src>

<mosaic_0001>
module attributes {stable_mosaic.version = 11 : i64} {
  func.func @_rnn_seq_kernel(%arg0: i32, %arg1: i32, %arg2: memref<1x16x128xf32, #tpu.memory_space<vmem>>, %arg3: memref<16x128xf32, #tpu.memory_space<vmem>>, %arg4: memref<128x128xbf16, #tpu.memory_space<vmem>>, %arg5: memref<1x16x128xbf16, #tpu.memory_space<vmem>>, %arg6: memref<16x128xf32, #tpu.memory_space<vmem>>) attributes {dimension_semantics = [#tpu.dimension_semantics<parallel>, #tpu.dimension_semantics<arbitrary>], iteration_bounds = array<i64: 2, 1>, scalar_prefetch = 0 : i64, scratch_operands = 1 : i64, tpu.core_type = #tpu.core_type<tc>, window_params = [{transform_indices = @transform_0, window_bounds = array<i64: 1, 16, 128>}, {transform_indices = @transform_1, window_bounds = array<i64: 16, 128>}, {pipeline_mode = #tpu.pipeline_mode<synchronous>, transform_indices = @transform_2, window_bounds = array<i64: 128, 128>}, {transform_indices = @transform_3, window_bounds = array<i64: 1, 16, 128>}]} {
    %c0_i32 = arith.constant 0 : i32
    %0 = arith.cmpi eq, %arg1, %c0_i32 : i32
    %1 = arith.extui %0 : i1 to i32
    %c0_i32_0 = arith.constant 0 : i32
    %2 = arith.cmpi ne, %1, %c0_i32_0 : i32
    scf.if %2 {
      %c0_12 = arith.constant 0 : index
      %c0_13 = arith.constant 0 : index
      %16 = vector.load %arg3[%c0_12, %c0_13] : memref<16x128xf32, #tpu.memory_space<vmem>>, vector<16x128xf32>
      %c0_14 = arith.constant 0 : index
      %c0_15 = arith.constant 0 : index
      %17 = vector.load %arg6[%c0_14, %c0_15] : memref<16x128xf32, #tpu.memory_space<vmem>>, vector<16x128xf32>
      tpu.vector_store %arg6[%c0_14, %c0_15], %16 {strides = array<i32>} : memref<16x128xf32, #tpu.memory_space<vmem>>, vector<16x128xf32>,
    } else {
    }
    %c0 = arith.constant 0 : index
    %c0_1 = arith.constant 0 : index
    %3 = vector.load %arg6[%c0, %c0_1] : memref<16x128xf32, #tpu.memory_space<vmem>>, vector<16x128xf32>
    %4 = arith.truncf %3 : vector<16x128xf32> to vector<16x128xbf16>
    %c0_2 = arith.constant 0 : index
    %c0_3 = arith.constant 0 : index
    %c0_4 = arith.constant 0 : index
    %5 = vector.load %arg2[%c0_2, %c0_3, %c0_4] : memref<1x16x128xf32, #tpu.memory_space<vmem>>, vector<1x16x128xf32>
    %6 = vector.shape_cast %5 : vector<1x16x128xf32> to vector<16x128xf32>
    %c0_5 = arith.constant 0 : index
    %c0_6 = arith.constant 0 : index
    %7 = vector.load %arg4[%c0_5, %c0_6] : memref<128x128xbf16, #tpu.memory_space<vmem>>, vector<128x128xbf16>
    %cst = arith.constant dense<0.000000e+00> : vector<16x128xf32>
    %8 = tpu.matmul %4, %7, %cst {dimension_numbers = #tpu.dot_dimension_numbers<[1], [0], [0], [1], [0, 0, 1, 1], [], []>} : vector<16x128xbf16>, vector<128x128xbf16>, vector<16x128xf32> -> vector<16x128xf32>
    %9 = arith.addf %6, %8 : vector<16x128xf32>
    %10 = math.tanh %9 : vector<16x128xf32>
    %c0_7 = arith.constant 0 : index
    %c0_8 = arith.constant 0 : index
    %11 = vector.load %arg6[%c0_7, %c0_8] : memref<16x128xf32, #tpu.memory_space<vmem>>, vector<16x128xf32>
    tpu.vector_store %arg6[%c0_7, %c0_8], %10 {strides = array<i32>} : memref<16x128xf32, #tpu.memory_space<vmem>>, vector<16x128xf32>,
    %12 = arith.truncf %10 : vector<16x128xf32> to vector<16x128xbf16>
    %c0_9 = arith.constant 0 : index
    %c0_10 = arith.constant 0 : index
    %c0_11 = arith.constant 0 : index
    %13 = vector.load %arg5[%c0_9, %c0_10, %c0_11] : memref<1x16x128xbf16, #tpu.memory_space<vmem>>, vector<1x16x128xbf16>
    %14 = vector.shape_cast %13 : vector<1x16x128xbf16> to vector<16x128xbf16>
    %15 = vector.shape_cast %12 : vector<16x128xbf16> to vector<1x16x128xbf16>
    tpu.vector_store %arg5[%c0_9, %c0_10, %c0_11], %15 {strides = array<i32>} : memref<1x16x128xbf16, #tpu.memory_space<vmem>>, vector<1x16x128xbf16>,
    return
  }
  func.func @transform_0(%arg0: i32, %arg1: i32) -> (i32, i32, i32) {
    %c0_i32 = arith.constant 0 : i32
    %c0_i32_0 = arith.constant 0 : i32
    return %arg1, %arg0, %c0_i32 : i32, i32, i32
  }
  func.func @transform_1(%arg0: i32, %arg1: i32) -> (i32, i32) {
    %c0_i32 = arith.constant 0 : i32
    %c0_i32_0 = arith.constant 0 : i32
    return %arg0, %c0_i32 : i32, i32
  }
  func.func @transform_2(%arg0: i32, %arg1: i32) -> (i32, i32) {
    %c0_i32 = arith.constant 0 : i32
    %c0_i32_0 = arith.constant 0 : i32
    %c0_i32_1 = arith.constant 0 : i32
    return %c0_i32, %c0_i32_0 : i32, i32
  }
  func.func @transform_3(%arg0: i32, %arg1: i32) -> (i32, i32, i32) {
    %c0_i32 = arith.constant 0 : i32
    %c0_i32_0 = arith.constant 0 : i32
    return %arg1, %arg0, %c0_i32 : i32, i32, i32
  }
}

</mosaic_0001>

<llo_original>
// kernel: tpu_custom_call.1
$region0: #{tpu_custom_call.1}
  #allocation0 [shape = 'u32[]', space=smem, size = 0x4, offset = 0x4, fixed_abs, tag = 'smem constant byte address 0x4 - core index']
  #allocation1 [shape = 'u32[72,128]{1,0:T(1,128)}', space=vmem, size = 0x9000, scoped, tag = 'internal scratch']
  #allocation2 [shape = 'f32[16,128]{1,0:T(8,128)}', space=vmem, size = 0x2000, scoped, tag = 'scratch operand']
  %s0 = inlined_call_operand.hbm [shape: f32[1,32,128], index: 0, kind: input, shape index: {}]
  %s1 = inlined_call_operand.hbm [shape: f32[32,128], index: 1, kind: input, shape index: {}]
  %s2 = inlined_call_operand.hbm [shape: bf16[128,128], index: 2, kind: input, shape index: {}]
  %s3 = inlined_call_operand.hbm [shape: bf16[1,32,128], index: 3, kind: output, shape index: {}]
  %s4 = sld [smem:[#allocation0]]
  $region61: #{tpu_custom_call.1} parent=0
    _
  %s6 = ssub.s32 1, %s4
  %s7 = scalar_select 0, %s6, %s4
  $region1: #{tpu_custom_call.1} parent=0
    #allocation3 [shape = 'u8[16384]{0}', space=vmem, size = 0x4000, scoped, tag = 'input window, operand 0']
    #allocation4 [shape = 's32[2]{0}', space=sflag, size = 0x8, scoped, tag = 'scoped memory for tpu_custom_call.1']
    #allocation5 [shape = 's32[2]{0}', space=sflag, size = 0x8, scoped, tag = 'scoped memory for tpu_custom_call.1']
    #allocation6 [shape = 'u8[16384]{0}', space=vmem, size = 0x4000, scoped, tag = 'input window, operand 1']
    #allocation7 [shape = 's32[2]{0}', space=sflag, size = 0x8, scoped, tag = 'scoped memory for tpu_custom_call.1']
    #allocation8 [shape = 'u8[32768]{0}', space=vmem, size = 0x8000, scoped, tag = 'input window, operand 2, single buffered']
    #allocation9 [shape = 'u8[8192]{0}', space=vmem, size = 0x2000, scoped, tag = 'output window, operand 0']
    %8 = vsyncpa [#allocation4], 0
    %s9 = scalar_lea.sflag [#allocation4], 1
    %10 = vsyncpa %s9, 0
    %11 = vsyncpa [#allocation7], 0
    %s12 = scalar_lea.sflag [#allocation7], 1
    %13 = vsyncpa %s12, 0
    %14 = vsyncpa [#allocation5], 0
    %s15 = scalar_lea.sflag [#allocation5], 1
    %16 = vsyncpa %s15, 0
    loop: start=0, step=1, limit=4
    $region2: #{tpu_custom_call.1} parent=1 // loop_pre_header
      _
    $region3: #{tpu_custom_call.1} parent=1 // loop_header
      %s18 = sphi 0, %s22
      %p19 = scmp.ge.s32.totalorder %s18, 4
      %s25 = sphi 0, %s37
      %s26 = sphi 0, %s33
      %s27 = sphi 0, %s25
      %s28 = sphi 0, %s26
      %s29 = sphi 0, %s27
      %s30 = sphi 0, %s28
      %s42 = sphi 0, %s44
      %s45 = sphi 0, %s42
      %s46 = sphi 0, %s45
      %s62 = sphi 0, %s46
      %s68 = sphi 0, %s70
      %s71 = sphi 0, %s68
      %s72 = sphi 0, %s71
      %s88 = sphi 0, %s72
      %s92 = sphi 0, %s92
      %s94 = sphi 0, %s92
      %s95 = sphi 0, %s94
      %s109 = sphi 0, %s95
      %s117 = sphi 0, %s119
      %s120 = sphi 0, %s117
      %s121 = sphi 0, %s120
      %s137 = sphi 0, %s121
    $region4: #{tpu_custom_call.1} parent=1 // loop_header_branch
      %21 = sbr.rel (%p19) target = $region8
    $region5: #{tpu_custom_call.1} parent=1 // loop_body
      %s23 = ssub.s32 %s18, 1
      %s24 = ssub.s32 %s18, 2
      %s31 = sadd.s32 1, %s26
      %p32 = scmp.ge.s32.totalorder %s31, 1
      %s33 = scalar_select %p32, 0, %s31
      %s34 = sadd.s32 1, %s25
      %s35 = scalar_select %p32, %s34, %s25
      %p36 = scmp.ge.s32.totalorder %s35, 2
      %s37 = scalar_select %p36, 0, %s35
      %s38 = ssub.s32 %s26, %s33
      %s39 = ssub.s32 %s25, %s37
      %s40 = sor.u32 %s38, %s39
      %p41 = scmp.eq.s32.totalorder %s40, 0
      %s43 = sadd.s32 %s42, 1
      %s44 = scalar_select %p41, %s42, %s43
      %p47 = pneg %p41
      %p48 = scmp.eq.s32.totalorder %s18, 1
      %p49 = por %p47, %p48
      %p50 = scmp.ne.s32.totalorder %s42, %s45
      %p51 = scmp.eq.s32.totalorder %s18, 0
      %p52 = por %p50, %p51
      %p53 = scmp.ne.s32.totalorder %s42, %s45
      %p54 = scmp.eq.s32.totalorder %s23, 1
      %p55 = por %p53, %p54
      %p56 = scmp.ne.s32.totalorder %s45, %s46
      %p57 = scmp.eq.s32.totalorder %s23, 0
      %p58 = por %p56, %p57
      %p59 = scmp.ne.s32.totalorder %s45, %s46
      %p60 = scmp.eq.s32.totalorder %s24, 1
      %p61 = por %p59, %p60
      %p63 = scmp.ne.s32.totalorder %s46, %s62
      %p64 = scmp.eq.s32.totalorder %s24, 0
      %p65 = por %p63, %p64
      %s66 = ssub.s32 %s25, %s37
      %p67 = scmp.eq.s32.totalorder %s66, 0
      %s69 = sadd.s32 %s68, 1
      %s70 = scalar_select %p67, %s68, %s69
      %p73 = pneg %p67
      %p74 = scmp.eq.s32.totalorder %s18, 1
      %p75 = por %p73, %p74
      %p76 = scmp.ne.s32.totalorder %s68, %s71
      %p77 = scmp.eq.s32.totalorder %s18, 0
      %p78 = por %p76, %p77
      %p79 = scmp.ne.s32.totalorder %s68, %s71
      %p80 = scmp.eq.s32.totalorder %s23, 1
      %p81 = por %p79, %p80
      %p82 = scmp.ne.s32.totalorder %s71, %s72
      %p83 = scmp.eq.s32.totalorder %s23, 0
      %p84 = por %p82, %p83
      %p85 = scmp.ne.s32.totalorder %s71, %s72
      %p86 = scmp.eq.s32.totalorder %s24, 1
      %p87 = por %p85, %p86
      %p89 = scmp.ne.s32.totalorder %s72, %s88
      %p90 = scmp.eq.s32.totalorder %s24, 0
      %p91 = por %p89, %p90
      %s93 = sadd.s32 %s92, 1
      %p96 = scmp.eq.s32.totalorder %s18, 1
      %p97 = scmp.ne.s32.totalorder %s92, %s94
      %p98 = scmp.eq.s32.totalorder %s18, 0
      %p99 = por %p97, %p98
      %p100 = scmp.ne.s32.totalorder %s92, %s94
      %p101 = scmp.eq.s32.totalorder %s23, 1
      %p102 = por %p100, %p101
      %p103 = scmp.ne.s32.totalorder %s94, %s95
      %p104 = scmp.eq.s32.totalorder %s23, 0
      %p105 = por %p103, %p104
      %p106 = scmp.ne.s32.totalorder %s94, %s95
      %p107 = scmp.eq.s32.totalorder %s24, 1
      %p108 = por %p106, %p107
      %p110 = scmp.ne.s32.totalorder %s95, %s109
      %p111 = scmp.eq.s32.totalorder %s24, 0
      %p112 = por %p110, %p111
      %s113 = ssub.s32 %s26, %s33
      %s114 = ssub.s32 %s25, %s37
      %s115 = sor.u32 %s113, %s114
      %p116 = scmp.eq.s32.totalorder %s115, 0
      %s118 = sadd.s32 %s117, 1
      %s119 = scalar_select %p116, %s117, %s118
      %p122 = pneg %p116
      %p123 = scmp.eq.s32.totalorder %s18, 1
      %p124 = por %p122, %p123
      %p125 = scmp.ne.s32.totalorder %s117, %s120
      %p126 = scmp.eq.s32.totalorder %s18, 0
      %p127 = por %p125, %p126
      %p128 = scmp.ne.s32.totalorder %s117, %s120
      %p129 = scmp.eq.s32.totalorder %s23, 1
      %p130 = por %p128, %p129
      %p131 = scmp.ne.s32.totalorder %s120, %s121
      %p132 = scmp.eq.s32.totalorder %s23, 0
      %p133 = por %p131, %p132
      %p134 = scmp.ne.s32.totalorder %s120, %s121
      %p135 = scmp.eq.s32.totalorder %s24, 1
      %p136 = por %p134, %p135
      %p138 = scmp.ne.s32.totalorder %s121, %s137
      %p139 = scmp.eq.s32.totalorder %s24, 0
      %p140 = por %p138, %p139
      %p141 = scmp.le.s32.totalorder 1, %s18
      %p142 = scmp.lt.s32.totalorder %s18, 3
      %p143 = pnand %p141, %p142
      %p144 = pneg %p143
      // Predicated region
      $region9: #{tpu_custom_call.1} parent=5 // pred_check
        _
      $region10: #{tpu_custom_call.1} parent=5 // pred_check_branch
        %146 = sbr.rel (%p143) target = $region12
      $region11: #{tpu_custom_call.1} parent=5 // pred_region
        %s147 = ssub.s32 %s18, 1
        // Predicated region
        $region13: #{tpu_custom_call.1} parent=11 // pred_check
          %p148 = pneg %p105
        $region14: #{tpu_custom_call.1} parent=11 // pred_check_branch
          %150 = sbr.rel (%p148) target = $region16
        $region15: #{tpu_custom_call.1} parent=11 // pred_region
          %152 = vsyncadd [#allocation7], 0
          %s153 = sshll.u32 %s2, 4
          %s154 = int_to_ptr.hbm [resolvable:$true] %s153
          %s155 = sshll.u32 [#allocation8], 4
          %s156 = int_to_ptr.vmem [resolvable:$true] %s155
          %161 = dma.hbm_to_vmem [thread:$0]  %s154, 1024, %s156, [#allocation7], 64, 64, 4
        $region16: #{tpu_custom_call.1} parent=11 // pred_fallthru
          _
      $region12: #{tpu_custom_call.1} parent=5 // pred_fallthru
        _
      %p162 = scmp.lt.s32.totalorder %s18, 2
      // Predicated region
      $region17: #{tpu_custom_call.1} parent=5 // pred_check
        %p163 = pneg %p162
      $region18: #{tpu_custom_call.1} parent=5 // pred_check_branch
        %165 = sbr.rel (%p163) target = $region20
      $region19: #{tpu_custom_call.1} parent=5 // pred_region
        // Predicated region
        $region21: #{tpu_custom_call.1} parent=19 // pred_check
          %p166 = pneg %p52
        $region22: #{tpu_custom_call.1} parent=19 // pred_check_branch
          %168 = sbr.rel (%p166) target = $region24
        $region23: #{tpu_custom_call.1} parent=19 // pred_region
          %s169 = sand.u32 %s42, 1
          %s170 = scalar_lea.sflag [#allocation4], %s169
          %s171 = sand.u32 %s42, 1
          %s172 = smul.addr %s171, 16
          %s173 = scalar_lea.vmem [#allocation3], %s172
          %s174 = smul.u32 2, %s25
          %176 = vsyncadd %s170, 0
          %s177 = smul.addr %s26, 4
          %s178 = sadd.s32 %s174, %s177
          %s179 = smul.addr %s178, 8
          %s180 = scalar_lea.hbm %s0, %s179
          %s181 = sshll.u32 %s180, 4
          %s182 = int_to_ptr.hbm [resolvable:$true] %s181
          %s183 = sshll.u32 %s173, 4
          %s184 = int_to_ptr.vmem [resolvable:$true] %s183
          %189 = dma.hbm_to_vmem [thread:$0]  %s182, 256, %s184, %s170, 128, 128, 8
        $region24: #{tpu_custom_call.1} parent=19 // pred_fallthru
          _
        // Predicated region
        $region25: #{tpu_custom_call.1} parent=19 // pred_check
          %p190 = pneg %p78
        $region26: #{tpu_custom_call.1} parent=19 // pred_check_branch
          %192 = sbr.rel (%p190) target = $region28
        $region27: #{tpu_custom_call.1} parent=19 // pred_region
          %s193 = sand.u32 %s18, 1
          %s194 = scalar_lea.sflag [#allocation7], %s193
          %s195 = sand.u32 %s68, 1
          %s196 = smul.addr %s195, 16
          %s197 = scalar_lea.vmem [#allocation6], %s196
          %s198 = smul.u32 2, %s25
          %200 = vsyncadd %s194, 0
          %s201 = smul.addr %s198, 8
          %s202 = scalar_lea.hbm %s1, %s201
          %s203 = sshll.u32 %s202, 4
          %s204 = int_to_ptr.hbm [resolvable:$true] %s203
          %s205 = sshll.u32 %s197, 4
          %s206 = int_to_ptr.vmem [resolvable:$true] %s205
          %211 = dma.hbm_to_vmem [thread:$0]  %s204, 256, %s206, %s194, 128, 128, 8
        $region28: #{tpu_custom_call.1} parent=19 // pred_fallthru
          _
      $region20: #{tpu_custom_call.1} parent=5 // pred_fallthru
        _
      %p212 = scmp.le.s32.totalorder 1, %s18
      %p213 = scmp.lt.s32.totalorder %s18, 3
      %p214 = pnand %p212, %p213
      %p215 = pneg %p214
      // Predicated region
      $region29: #{tpu_custom_call.1} parent=5 // pred_check
        _
      $region30: #{tpu_custom_call.1} parent=5 // pred_check_branch
        %217 = sbr.rel (%p214) target = $region32
      $region31: #{tpu_custom_call.1} parent=5 // pred_region
        %s218 = ssub.s32 %s18, 1
        %s219 = sand.u32 %s45, 1
        %s220 = scalar_lea.sflag [#allocation4], %s219
        %s221 = sand.u32 %s45, 1
        %s222 = smul.addr %s221, 16
        %s223 = scalar_lea.vmem [#allocation3], %s222
        // Predicated region
        $region33: #{tpu_custom_call.1} parent=31 // pred_check
          %p224 = pneg %p58
        $region34: #{tpu_custom_call.1} parent=31 // pred_check_branch
          %226 = sbr.rel (%p224) target = $region36
        $region35: #{tpu_custom_call.1} parent=31 // pred_region
          %228 = dma.done %s220, 256
        $region36: #{tpu_custom_call.1} parent=31 // pred_fallthru
          _
        %s229 = sand.u32 %s23, 1
        %s230 = scalar_lea.sflag [#allocation7], %s229
        %s231 = sand.u32 %s71, 1
        %s232 = smul.addr %s231, 16
        %s233 = scalar_lea.vmem [#allocation6], %s232
        // Predicated region
        $region37: #{tpu_custom_call.1} parent=31 // pred_check
          %p234 = pneg %p84
        $region38: #{tpu_custom_call.1} parent=31 // pred_check_branch
          %236 = sbr.rel (%p234) target = $region40
        $region39: #{tpu_custom_call.1} parent=31 // pred_region
          %238 = dma.done %s230, 256
        $region40: #{tpu_custom_call.1} parent=31 // pred_fallthru
          _
        // Predicated region
        $region41: #{tpu_custom_call.1} parent=31 // pred_check
          %p239 = pneg %p105
        $region42: #{tpu_custom_call.1} parent=31 // pred_check_branch
          %241 = sbr.rel (%p239) target = $region44
        $region43: #{tpu_custom_call.1} parent=31 // pred_region
          %243 = dma.done [#allocation7], 1024
        $region44: #{tpu_custom_call.1} parent=31 // pred_fallthru
          _
        %s244 = sand.u32 %s45, 1
        %s245 = scalar_lea.sflag [#allocation4], %s244
        %s246 = sand.u32 %s45, 1
        %s247 = smul.addr %s246, 16
        %s248 = scalar_lea.vmem [#allocation3], %s247
        %p249 = pneg %p58
        %p250 = pneg %p55
        %s251 = sand.u32 %s23, 1
        %s252 = scalar_lea.sflag [#allocation7], %s251
        %s253 = sand.u32 %s71, 1
        %s254 = smul.addr %s253, 16
        %s255 = scalar_lea.vmem [#allocation6], %s254
        %p256 = pneg %p84
        %p257 = pneg %p81
        %p258 = pneg %p105
        %p259 = pneg %p102
        %p260 = pneg %p133
        %p261 = pneg %p130
        %s262 = sand.u32 %s120, 1
        %s263 = scalar_lea.sflag [#allocation5], %s262
        %s264 = sand.u32 %s120, 1
        %s265 = smul.addr %s264, 8
        %s266 = scalar_lea.vmem [#allocation9], %s265
        %s267 = smul.u32 2, %s27
        %s268 = smul.u32 2, %s27
        %s269 = smul.u32 2, %s27
        %p270 = scmp.eq.s32.totalorder %s28, 0
        // Predicated region
        $region45: #{tpu_custom_call.1} parent=31 // pred_check
          %p271 = pneg %p270
        $region46: #{tpu_custom_call.1} parent=31 // pred_check_branch
          %273 = sbr.rel (%p271) target = $region48
        $region47: #{tpu_custom_call.1} parent=31 // pred_region
          %v274 = vld [vmem:[%s233] sm:$0xff]
          %v275 = vld [vmem:[%s233 + $0x8] sm:$0xff]
          %276 = vst [vmem:[#allocation2] sm:$0xff] %v274
          %277 = vst [vmem:[#allocation2 + $0x8] sm:$0xff] %v275
        $region48: #{tpu_custom_call.1} parent=31 // pred_fallthru
          _
        %v278 = vld [vmem:[#allocation2] sm:$0xff]
        %v279 = vld [vmem:[#allocation2 + $0x8] sm:$0xff]
        %v280 = vpack.c.bf16 %v279, %v278
        %v281 = vld [vmem:[%s223] sm:$0xff]
        %v282 = vld [vmem:[%s223 + $0x8] sm:$0xff]
        %v283 = vld [vmem:[#allocation8] sm:$0xf]
        %v284 = vld [vmem:[#allocation8 + $0x4] sm:$0xf]
        %v285 = vld [vmem:[#allocation8 + $0x8] sm:$0xf]
        %v286 = vld [vmem:[#allocation8 + $0xc] sm:$0xf]
        %v287 = vld [vmem:[#allocation8 + $0x10] sm:$0xf]
        %v288 = vld [vmem:[#allocation8 + $0x14] sm:$0xf]
        %v289 = vld [vmem:[#allocation8 + $0x18] sm:$0xf]
        %v290 = vld [vmem:[#allocation8 + $0x1c] sm:$0xf]
        %v291 = vld [vmem:[#allocation8 + $0x20] sm:$0xf]
        %v292 = vld [vmem:[#allocation8 + $0x24] sm:$0xf]
        %v293 = vld [vmem:[#allocation8 + $0x28] sm:$0xf]
        %v294 = vld [vmem:[#allocation8 + $0x2c] sm:$0xf]
        %v295 = vld [vmem:[#allocation8 + $0x30] sm:$0xf]
        %v296 = vld [vmem:[#allocation8 + $0x34] sm:$0xf]
        %v297 = vld [vmem:[#allocation8 + $0x38] sm:$0xf]
        %v298 = vld [vmem:[#allocation8 + $0x3c] sm:$0xf]
        %v315 = vunpack.c.l.b16 %v283
        %v316 = vunpack.c.l.b16 %v284
        %v317 = vunpack.c.l.b16 %v285
        %v318 = vunpack.c.l.b16 %v286
        %v319 = vunpack.c.l.b16 %v287
        %v320 = vunpack.c.l.b16 %v288
        %v321 = vunpack.c.l.b16 %v289
        %v322 = vunpack.c.l.b16 %v290
        %v323 = vunpack.c.l.b16 %v291
        %v324 = vunpack.c.l.b16 %v292
        %v325 = vunpack.c.l.b16 %v293
        %v326 = vunpack.c.l.b16 %v294
        %v327 = vunpack.c.l.b16 %v295
        %v328 = vunpack.c.l.b16 %v296
        %v329 = vunpack.c.l.b16 %v297
        %v330 = vunpack.c.l.b16 %v298
        %v331 = vpack.c.b16 %v316, %v315
        %v332 = vpack.c.b16 %v318, %v317
        %v333 = vpack.c.b16 %v320, %v319
        %v334 = vpack.c.b16 %v322, %v321
        %v335 = vpack.c.b16 %v324, %v323
        %v336 = vpack.c.b16 %v326, %v325
        %v337 = vpack.c.b16 %v328, %v327
        %v338 = vpack.c.b16 %v330, %v329
        %347 = vmatpush.bf16.msra.mxu0 %v338
        %348 = vmatpush.bf16.msra.mxu0 %v337
        %349 = vmatpush.bf16.msra.mxu0 %v336
        %350 = vmatpush.bf16.msra.mxu0 %v335
        %351 = vmatpush.bf16.msra.mxu0 %v334
        %352 = vmatpush.bf16.msra.mxu0 %v333
        %353 = vmatpush.bf16.msra.mxu0 %v332
        %354 = vmatpush.bf16.msra.mxu0 %v331
        %355 = vmatmul.bf16.gmra.mxu0 %v280
        %v356 = vpop.f32.mrf.mxu0
        %v357 = vadd.f32 0.0, %v356
        %v358 = vpop.f32.mrf.mxu0
        %v359 = vadd.f32 0.0, %v358
        %360 = vdwg.mxu0
        %v361 = vadd.f32 %v281, %v357
        %v362 = vadd.f32 %v282, %v359
        %v363 = vtanh.pop %v361
        %v364 = vtanh.pop %v362
        %365 = vst [vmem:[#allocation2] sm:$0xff] %v363
        %366 = vst [vmem:[#allocation2 + $0x8] sm:$0xff] %v364
        %v367 = vpack.c.bf16 %v363, %v363
        %v368 = vpack.c.bf16 %v364, %v364
        %369 = vst [vmem:[%s266] sm:$0xf] %v367
        %370 = vst [vmem:[%s266 + $0x4] sm:$0xf] %v368
        %s371 = sand.u32 %s120, 1
        %s372 = scalar_lea.sflag [#allocation5], %s371
        %s373 = sand.u32 %s120, 1
        %s374 = smul.addr %s373, 8
        %s375 = scalar_lea.vmem [#allocation9], %s374
        // Predicated region
        $region49: #{tpu_custom_call.1} parent=31 // pred_check
          %p376 = pneg %p130
        $region50: #{tpu_custom_call.1} parent=31 // pred_check_branch
          %378 = sbr.rel (%p376) target = $region52
        $region51: #{tpu_custom_call.1} parent=31 // pred_region
          %s379 = smul.u32 2, %s27
          %381 = vsyncadd %s372, 0
          %s382 = smul.addr %s28, 4
          %s383 = sadd.s32 %s379, %s382
          %s384 = smul.addr %s383, 4
          %s385 = scalar_lea.hbm %s3, %s384
          %s386 = sshll.u32 %s375, 4
          %s387 = int_to_ptr.vmem [resolvable:$true] %s386
          %s388 = sshll.u32 %s385, 4
          %s389 = int_to_ptr.hbm [resolvable:$true] %s388
          %394 = dma.vmem_to_hbm [thread:$0]  %s387, 128, %s389, %s372, 64, 64, 4
        $region52: #{tpu_custom_call.1} parent=31 // pred_fallthru
          _
      $region32: #{tpu_custom_call.1} parent=5 // pred_fallthru
        _
      %p395 = scmp.le.s32.totalorder 2, %s18
      // Predicated region
      $region53: #{tpu_custom_call.1} parent=5 // pred_check
        %p396 = pneg %p395
      $region54: #{tpu_custom_call.1} parent=5 // pred_check_branch
        %398 = sbr.rel (%p396) target = $region56
      $region55: #{tpu_custom_call.1} parent=5 // pred_region
        %s399 = ssub.s32 %s18, 2
        // Predicated region
        $region57: #{tpu_custom_call.1} parent=55 // pred_check
          %p400 = pneg %p136
        $region58: #{tpu_custom_call.1} parent=55 // pred_check_branch
          %402 = sbr.rel (%p400) target = $region60
        $region59: #{tpu_custom_call.1} parent=55 // pred_region
          %s403 = sand.u32 %s121, 1
          %s404 = scalar_lea.sflag [#allocation5], %s403
          %s405 = sand.u32 %s121, 1
          %s406 = smul.addr %s405, 8
          %s407 = scalar_lea.vmem [#allocation9], %s406
          %409 = dma.done %s404, 128
        $region60: #{tpu_custom_call.1} parent=55 // pred_fallthru
          _
      $region56: #{tpu_custom_call.1} parent=5 // pred_fallthru
        _
    $region6: #{tpu_custom_call.1} parent=1 // loop_footer
      %s22 = sadd.s32 1, %s18
    $region7: #{tpu_custom_call.1} parent=1 // loop_footer_branch
      %17 = sbr.rel target = $region3
    $region8: #{tpu_custom_call.1} parent=1 // loop_exit
      _
    %410 = vsyncpa [#allocation4], 1
    %s411 = scalar_lea.sflag [#allocation4], 1
    %412 = vsyncpa %s411, 1
    %413 = vsyncpa [#allocation7], 1
    %s414 = scalar_lea.sflag [#allocation7], 1
    %415 = vsyncpa %s414, 1
    %416 = vsyncpa [#allocation5], 1
    %s417 = scalar_lea.sflag [#allocation5], 1
    %418 = vsyncpa %s417, 1

</llo_original>
